<compile_context>
chip_gen: v7x
topology: tpu7x:2x2x1
jax: 0.10.0
libtpu: 0.0.40
codegen_flags: <defaults>
</compile_context>

<pallas_src>
import functools

import jax
import jax.numpy as jnp
from jax.experimental import pallas as pl
from jax.experimental.pallas import tpu as pltpu

LANE = 128      # lane width (fast axis)
SUBLANE = 8     # sublane alignment for f32


def _round_up(x, m):
    return (x + m - 1) // m * m


def _device_kind():
    try:
        return jax.devices()[0].device_kind.lower()
    except Exception:
        return ""


def _is_v7x(kind):
    return ("v7" in kind) or ("7x" in kind)


def _vmem_capacity_bytes(kind):
    try:
        cap = int(pltpu.get_tpu_info().vmem_capacity_bytes)
        if cap > 0:
            return cap
    except Exception:
        pass
    return (64 << 20) if _is_v7x(kind) else (128 << 20)


def _num_tensorcores(kind):
    k = kind.replace(" ", "")
    if _is_v7x(k):
        return 2
    # v4 / v5p megacore chips expose 2 TensorCores behind one device.
    if ("v5p" in k) or ("v4" in k and "lite" not in k):
        return 2
    return 1


def _fused_loss_kernel(*refs, term_specs, n_masks, rows, row_tile,
                       nblocks, bpc, needs_row_mask, has_ghost):
    """Fused masked elementwise losses + per-core running sums.

    refs layout:
      inputs : pred, target, mask_0 .. mask_{n_masks-1}     ([row_tile, 128])
      outputs: loss_0 .. loss_{T-1}                         ([row_tile, 128])
               sum_0  .. sum_{T-1}                          ([1, 8, 128] per-core)
               msum_0 .. msum_{n_masks-1}                   ([1, 8, 128] per-core)
      scratch: acc_0  .. acc_{T-1}, macc_0 .. macc_{n_masks-1}  (VMEM f32 blocks)

    term_specs: tuple of (loss_kind, mask_idx); mask_idx == -1 means unmasked.
    """
    n_terms = len(term_specs)
    n_in = 2 + n_masks
    pred_ref, tgt_ref = refs[0], refs[1]
    mask_refs = refs[2:n_in]
    off = n_in
    loss_refs = refs[off:off + n_terms]; off += n_terms
    sum_refs = refs[off:off + n_terms]; off += n_terms
    msum_refs = refs[off:off + n_masks]; off += n_masks
    acc_refs = refs[off:off + n_terms]; off += n_terms
    macc_refs = refs[off:off + n_masks]

    c = pl.program_id(0)          # core / parallel chunk
    i = pl.program_id(1)          # sequential row-block within the chunk

    @pl.when(i == 0)
    def _init():
        for a in acc_refs:
            a[...] = jnp.zeros_like(a)
        for a in macc_refs:
            a[...] = jnp.zeros_like(a)

    # Cast after the load (native-dtype HBM streams; VPU cast hides under DMA).
    diff = pred_ref[...].astype(jnp.float32) - tgt_ref[...].astype(jnp.float32)
    masks = [m[...].astype(jnp.float32) for m in mask_refs]

    valid = None
    if needs_row_mask:
        # Static clamp consistent with the index_map: ghost blocks re-visit the
        # last real block; the out-of-range rows of a partial block read
        # unspecified data and must be zeroed before accumulation / store.
        b = c * bpc + i
        if has_ghost:
            b = jnp.minimum(b, nblocks - 1)
        row0 = b * row_tile
        rid = jax.lax.broadcasted_iota(jnp.int32, (row_tile, LANE), 0)
        valid = (row0 + rid) < rows
        masks = [jnp.where(valid, m, 0.0) for m in masks]

    losses = []
    for (loss_kind, mask_idx) in term_specs:
        if loss_kind == "l1":
            l = jnp.abs(diff)
        elif loss_kind == "l2":
            l = diff * diff
        else:
            raise ValueError("unsupported loss_kind: {}".format(loss_kind))
        if mask_idx >= 0:
            l = l * masks[mask_idx]
        if valid is not None:
            l = jnp.where(valid, l, 0.0)
        losses.append(l)

    for ti in range(n_terms):
        loss_refs[ti][...] = losses[ti].astype(loss_refs[ti].dtype)

    def _accumulate():
        for ti in range(n_terms):
            acc_refs[ti][...] += losses[ti]          # pure VPU elementwise adds
        for mi in range(n_masks):
            macc_refs[mi][...] += masks[mi]

    if has_ghost:
        # Ghost iterations (clamped duplicates of the last block on the last
        # core) must not double count.
        pl.when(c * bpc + i < nblocks)(_accumulate)
    else:
        _accumulate()

    # Expensive cross-lane/sublane reduction only once per core, on the last step.
    @pl.when(i == bpc - 1)
    def _finalize():
        for ti in range(n_terms):
            sum_refs[ti][...] = jnp.full(sum_refs[ti].shape,
                                         jnp.sum(acc_refs[ti][...]),
                                         dtype=sum_refs[ti].dtype)
        for mi in range(n_masks):
            msum_refs[mi][...] = jnp.full(msum_refs[mi].shape,
                                          jnp.sum(macc_refs[mi][...]),
                                          dtype=msum_refs[mi].dtype)


def fused_masked_losses(pred, target, masks, term_specs, *,
                        elementwise_dtype=None,
                        _force_row_tile=None, _force_num_cores=None):
    """Compute all loss terms that share (pred, target) in a single HBM pass.

    masks:      list of arrays with pred's shape (distinct masks, may be empty)
    term_specs: sequence of (loss_kind, mask_idx) with mask_idx in [-1, len(masks))

    Returns (elementwise_losses, term_sums, mask_sums):
      elementwise_losses[i] has pred's shape (dtype elementwise_dtype or pred.dtype),
      term_sums[i] = sum(loss_i [* mask]) as f32 scalar,
      mask_sums[j] = sum(masks[j]) as f32 scalar.
    """
    term_specs = tuple((str(k), int(m)) for k, m in term_specs)
    n_terms = len(term_specs)
    n_masks = len(masks)
    orig_shape = pred.shape
    n = pred.size
    out_dtype = pred.dtype if elementwise_dtype is None else jnp.dtype(elementwise_dtype)

    # ---- flatten without copies on the common path -------------------------
    pad_to_lane = (n % LANE) != 0
    n_lane = _round_up(n, LANE)
    rows = n_lane // LANE

    def prep(x):
        if x.dtype == jnp.bool_:
            x = x.astype(jnp.uint8)      # bool loads are awkward; 1-byte stream
        flat = x.reshape(-1)             # layout-preserving, no copy
        if pad_to_lane:
            # Rare fallback (n not a multiple of 128): pad with zeros, which
            # contribute 0 to every loss / mask sum.
            flat = jnp.pad(flat, (0, n_lane - n))
        return flat.reshape(rows, LANE)

    p2 = prep(pred)
    t2 = prep(target)
    m2s = [prep(m) for m in masks]

    # ---- device-aware tiling ------------------------------------------------
    kind = _device_kind()
    phys_vmem = _vmem_capacity_bytes(kind)
    max_row_tile = 4096 if _is_v7x(kind) else 2048
    budget = min(phys_vmem // 2, 48 << 20)

    def isz(x):
        return jnp.dtype(x.dtype).itemsize

    # double-buffered input/output streams + single-buffered f32 accumulators
    stream_bytes_per_row = LANE * (
        2 * (isz(p2) + isz(t2) + sum(isz(m) for m in m2s))
        + 2 * n_terms * jnp.dtype(out_dtype).itemsize
        + 4 * (n_terms + n_masks))
    fit_rows = max(SUBLANE, (budget // stream_bytes_per_row) // SUBLANE * SUBLANE)
    row_tile = int(min(max_row_tile, fit_rows, _round_up(rows, SUBLANE)))
    if _force_row_tile is not None:
        row_tile = max(SUBLANE, _round_up(int(_force_row_tile), SUBLANE))
        row_tile = min(row_tile, int(_round_up(rows, SUBLANE)))

    nblocks = pl.cdiv(rows, row_tile)
    nc = _num_tensorcores(kind) if _force_num_cores is None else int(_force_num_cores)
    nc = max(1, nc)
    if nblocks < nc:
        nc = 1
    bpc = pl.cdiv(nblocks, nc)
    has_ghost = (nc * bpc) != nblocks
    needs_row_mask = (rows % row_tile) != 0

    est_vmem = stream_bytes_per_row * row_tile + (1 << 20)
    vmem_limit = int(min(phys_vmem - (2 << 20), max(est_vmem + (4 << 20), 32 << 20)))

    if has_ghost:
        def _rb(c, i):
            return jnp.minimum(c * bpc + i, nblocks - 1)
    else:
        def _rb(c, i):
            return c * bpc + i

    data_blk = pl.BlockSpec((row_tile, LANE), lambda c, i: (_rb(c, i), 0))
    scalar_blk = pl.BlockSpec((1, SUBLANE, LANE), lambda c, i: (c, 0, 0))

    in_specs = [data_blk] * (2 + n_masks)
    out_shape = tuple(
        [jax.ShapeDtypeStruct((rows, LANE), out_dtype)] * n_terms
        + [jax.ShapeDtypeStruct((nc, SUBLANE, LANE), jnp.float32)] * (n_terms + n_masks))
    out_specs = tuple([data_blk] * n_terms + [scalar_blk] * (n_terms + n_masks))
    scratch_shapes = [pltpu.VMEM((row_tile, LANE), jnp.float32)
                      for _ in range(n_terms + n_masks)]

    kernel = functools.partial(
        _fused_loss_kernel, term_specs=term_specs, n_masks=n_masks,
        rows=rows, row_tile=row_tile, nblocks=nblocks, bpc=bpc,
        needs_row_mask=needs_row_mask, has_ghost=has_ghost)

    outs = pl.pallas_call(
        kernel,
        out_shape=out_shape,
        grid=(nc, bpc),
        in_specs=in_specs,
        out_specs=out_specs,
        scratch_shapes=scratch_shapes,
        compiler_params=pltpu.CompilerParams(
            dimension_semantics=("parallel", "arbitrary"),
            vmem_limit_bytes=vmem_limit),
    )(p2, t2, *m2s)

    loss_outs = outs[:n_terms]
    sum_outs = outs[n_terms:2 * n_terms]
    msum_outs = outs[2 * n_terms:]

    elementwise = []
    for lo in loss_outs:
        flat = lo.reshape(-1)
        if pad_to_lane:
            flat = flat[:n]
        elementwise.append(flat.reshape(orig_shape))
    # add per-core partial sums
    term_sums = [jnp.sum(s[:, 0, 0]) for s in sum_outs]
    mask_sums = [jnp.sum(s[:, 0, 0]) for s in msum_outs]
    return elementwise, term_sums, mask_sums


class BaseOfModelPallas:
    """JAX/Pallas port of Base_of_Model's loss-computation path.

    loss_computer: {group_name: {loss_name: (loss_kind, loss_rate, loss_mask_fmt_or_None)}}
    loss_kind is 'l1' or 'l2'.
    """

    def __init__(self, loss_options):
        self.loss_computer = loss_options
        self.forward_st_epochs = {g: 0 for g in loss_options}
        self.now_group_name = list(loss_options.keys())[0]
        self.inputs = None
        self.is_train = False
        # TODO(synk): forward / _initialize_model / _preprocess_inputs /
        # _postprocess_outputs are abstract in the PyTorch base class (raise
        # NotImplementedError); the optimizer / backward / DDP machinery of
        # train_forward (and a custom VJP for the fused kernel) is left to the
        # trainer and not implemented here.

    def _compute_losses(self, sides, outputs, losses, add_loss=True):
        # Mirrors Base_of_Model._compute_losses (minus autograd / codyra branches).
        loss_inputs = {}
        for k, v in outputs.items():
            loss_inputs[k] = v
        for k, v in self.inputs.items():
            loss_inputs[k] = v

        loss_terms = self.loss_computer[self.now_group_name]
        losses[self.now_group_name + '-loss'] = 0.0

        for train_side in sides:
            pred = loss_inputs['pred_{}'.format(train_side)]
            target = loss_inputs['target_{}'.format(train_side)]

            # Collect terms and distinct masks so pred/target/each mask are
            # streamed from HBM exactly once for all fused loss terms.
            mask_keys = []
            names, rates, term_specs = [], [], []
            for loss_name, (loss_kind, loss_rate, loss_mask) in loss_terms.items():
                if loss_mask is not None:
                    mkey = loss_mask.format(train_side)
                    if mkey not in mask_keys:
                        mask_keys.append(mkey)
                    midx = mask_keys.index(mkey)
                else:
                    midx = -1
                names.append(loss_name)
                rates.append(loss_rate)
                term_specs.append((loss_kind, midx))

            # Masks stream in their native (possibly narrow) storage dtype.
            mask_arrays = [loss_inputs[k] for k in mask_keys]
            elem_losses, term_sums, mask_sums = fused_masked_losses(
                pred, target, mask_arrays, term_specs)

            n_elem = float(pred.size)
            for ti, loss_name in enumerate(names):
                s_loss = term_sums[ti]
                mean_loss = s_loss / n_elem                    # loss.mean()
                midx = term_specs[ti][1]
                if midx >= 0:
                    # NOTE: like the PyTorch original, divides by mask.sum()
                    # (inf/nan if the mask is all zero).
                    record_mean = s_loss / mask_sums[midx]     # loss.sum()/mask.sum()
                else:
                    record_mean = mean_loss                    # loss.mean()

                loss_value = rates[ti] * mean_loss
                if add_loss:
                    losses[self.now_group_name + '-loss'] = (
                        losses[self.now_group_name + '-loss'] + loss_value)
                    losses['loss'] = losses['loss'] + jax.lax.stop_gradient(loss_value)
                losses['{}/{}'.format(loss_name, train_side)] = elem_losses[ti]
                losses['{}/{}-value'.format(train_side, loss_name)] = record_mean
        return losses


if __name__ == "__main__":
    key = jax.random.PRNGKey(0)
    k1, k2, k3 = jax.random.split(key, 3)

    B, C, H, W = 2, 4, 16, 16
    pred = jax.random.normal(k1, (B, C, H, W), dtype=jnp.float32)
    target = jax.random.normal(k2, (B, C, H, W), dtype=jnp.float32)
    mask = (jax.random.uniform(k3, (B, C, H, W)) > 0.5).astype(jnp.float32)

    loss_options = {
        'depth': {
            'l1_masked': ('l1', 0.5, 'mask_{}'),
            'l2_plain': ('l2', 1.0, None),
        }
    }
    model = BaseOfModelPallas(loss_options)
    model.inputs = {'target_s': target, 'mask_s': mask}
    outputs = {'pred_s': pred}
    losses = {'loss': 0.0}

    losses = model._compute_losses(['s'], outputs, losses)
    jax.block_until_ready(losses)

    # sanity check vs. pure-JAX reference of the PyTorch semantics
    l1 = jnp.abs(pred - target) * mask
    l2 = (pred - target) ** 2
    ref_total = 0.5 * l1.mean() + 1.0 * l2.mean()
    assert jnp.allclose(losses['depth-loss'], ref_total, rtol=1e-5, atol=1e-5)
    assert jnp.allclose(losses['l1_masked/s'], l1, rtol=1e-5, atol=1e-5)
    assert jnp.allclose(losses['l2_plain/s'], l2, rtol=1e-5, atol=1e-5)
    assert jnp.allclose(losses['s/l1_masked-value'], l1.sum() / mask.sum(),
                        rtol=1e-5, atol=1e-5)
    assert jnp.allclose(losses['s/l2_plain-value'], l2.mean(), rtol=1e-5, atol=1e-5)

    # remainder handling: element count not a multiple of 128 (fallback path)
    kp, kt, km = jax.random.split(jax.random.PRNGKey(1), 3)
    op = jax.random.normal(kp, (2, 3, 5, 7), dtype=jnp.float32)
    ot = jax.random.normal(kt, (2, 3, 5, 7), dtype=jnp.float32)
    om = (jax.random.uniform(km, (2, 3, 5, 7)) > 0.5).astype(jnp.float32)
    el, ts, ms = fused_masked_losses(op, ot, [om], [('l1', 0), ('l2', -1)])
    jax.block_until_ready((el, ts, ms))
    ref_l1 = jnp.abs(op - ot) * om
    ref_l2 = (op - ot) ** 2
    assert jnp.allclose(el[0], ref_l1, rtol=1e-5, atol=1e-5)
    assert jnp.allclose(el[1], ref_l2, rtol=1e-5, atol=1e-5)
    assert jnp.allclose(ts[0], ref_l1.sum(), rtol=1e-5, atol=1e-5)
    assert jnp.allclose(ts[1], ref_l2.sum(), rtol=1e-5, atol=1e-5)
    assert jnp.allclose(ms[0], om.sum(), rtol=1e-5, atol=1e-5)

    # multi-block grid + in-kernel partial-last-block masking + dual-core split
    # with a ghost block (exercises the v7x path; each core chunk is
    # self-contained, so this is also correct when run serially on one core).
    kp, kt, km = jax.random.split(jax.random.PRNGKey(2), 3)
    xp = jax.random.normal(kp, (2, 4, 16, 20), dtype=jnp.float32)   # 2560 elems -> 20 rows
    xt = jax.random.normal(kt, (2, 4, 16, 20), dtype=jnp.float32)
    xm = (jax.random.uniform(km, (2, 4, 16, 20)) > 0.5).astype(jnp.float32)
    el, ts, ms = fused_masked_losses(xp, xt, [xm], [('l1', 0), ('l2', -1)],
                                     _force_row_tile=8, _force_num_cores=2)
    jax.block_until_ready((el, ts, ms))
    ref_l1 = jnp.abs(xp - xt) * xm
    ref_l2 = (xp - xt) ** 2
    assert jnp.allclose(el[0], ref_l1, rtol=1e-5, atol=1e-5)
    assert jnp.allclose(el[1], ref_l2, rtol=1e-5, atol=1e-5)
    assert jnp.allclose(ts[0], ref_l1.sum(), rtol=1e-5, atol=1e-5)
    assert jnp.allclose(ts[1], ref_l2.sum(), rtol=1e-5, atol=1e-5)
    assert jnp.allclose(ms[0], xm.sum(), rtol=1e-5, atol=1e-5)

    print("KERNEL_OK")
</pallas_src>

<mosaic_0001>
module attributes {stable_mosaic.version = 11 : i64} {
  func.func @_fused_loss_kernel(%arg0: i32, %arg1: i32, %arg2: memref<16x128xf32, #tpu.memory_space<vmem>>, %arg3: memref<16x128xf32, #tpu.memory_space<vmem>>, %arg4: memref<16x128xf32, #tpu.memory_space<vmem>>, %arg5: memref<16x128xf32, #tpu.memory_space<vmem>>, %arg6: memref<16x128xf32, #tpu.memory_space<vmem>>, %arg7: memref<1x8x128xf32, #tpu.memory_space<vmem>>, %arg8: memref<1x8x128xf32, #tpu.memory_space<vmem>>, %arg9: memref<1x8x128xf32, #tpu.memory_space<vmem>>, %arg10: memref<16x128xf32, #tpu.memory_space<vmem>>, %arg11: memref<16x128xf32, #tpu.memory_space<vmem>>, %arg12: memref<16x128xf32, #tpu.memory_space<vmem>>) attributes {dimension_semantics = [#tpu.dimension_semantics<parallel>, #tpu.dimension_semantics<arbitrary>], iteration_bounds = array<i64: 1, 1>, scalar_prefetch = 0 : i64, scratch_operands = 3 : i64, tpu.core_type = #tpu.core_type<tc>, window_params = [{transform_indices = @transform_0, window_bounds = array<i64: 16, 128>}, {transform_indices = @transform_1, window_bounds = array<i64: 16, 128>}, {transform_indices = @transform_2, window_bounds = array<i64: 16, 128>}, {transform_indices = @transform_3, window_bounds = array<i64: 16, 128>}, {transform_indices = @transform_4, window_bounds = array<i64: 16, 128>}, {transform_indices = @transform_5, window_bounds = array<i64: 1, 8, 128>}, {transform_indices = @transform_6, window_bounds = array<i64: 1, 8, 128>}, {transform_indices = @transform_7, window_bounds = array<i64: 1, 8, 128>}]} {
    %c0_i32 = arith.constant 0 : i32
    %0 = arith.cmpi eq, %arg1, %c0_i32 : i32
    %1 = arith.extui %0 : i1 to i32
    %c0_i32_0 = arith.constant 0 : i32
    %2 = arith.cmpi ne, %1, %c0_i32_0 : i32
    scf.if %2 {
      %cst = arith.constant 0.000000e+00 : f32
      %24 = vector.broadcast %cst : f32 to vector<16x128xf32>
      %c0_24 = arith.constant 0 : index
      %c0_25 = arith.constant 0 : index
      %25 = vector.load %arg10[%c0_24, %c0_25] : memref<16x128xf32, #tpu.memory_space<vmem>>, vector<16x128xf32>
      tpu.vector_store %arg10[%c0_24, %c0_25], %24 {strides = array<i32>} : memref<16x128xf32, #tpu.memory_space<vmem>>, vector<16x128xf32>,
      %cst_26 = arith.constant 0.000000e+00 : f32
      %26 = vector.broadcast %cst_26 : f32 to vector<16x128xf32>
      %c0_27 = arith.constant 0 : index
      %c0_28 = arith.constant 0 : index
      %27 = vector.load %arg11[%c0_27, %c0_28] : memref<16x128xf32, #tpu.memory_space<vmem>>, vector<16x128xf32>
      tpu.vector_store %arg11[%c0_27, %c0_28], %26 {strides = array<i32>} : memref<16x128xf32, #tpu.memory_space<vmem>>, vector<16x128xf32>,
      %cst_29 = arith.constant 0.000000e+00 : f32
      %28 = vector.broadcast %cst_29 : f32 to vector<16x128xf32>
      %c0_30 = arith.constant 0 : index
      %c0_31 = arith.constant 0 : index
      %29 = vector.load %arg12[%c0_30, %c0_31] : memref<16x128xf32, #tpu.memory_space<vmem>>, vector<16x128xf32>
      tpu.vector_store %arg12[%c0_30, %c0_31], %28 {strides = array<i32>} : memref<16x128xf32, #tpu.memory_space<vmem>>, vector<16x128xf32>,
    } else {
    }
    %c0 = arith.constant 0 : index
    %c0_1 = arith.constant 0 : index
    %3 = vector.load %arg2[%c0, %c0_1] : memref<16x128xf32, #tpu.memory_space<vmem>>, vector<16x128xf32>
    %c0_2 = arith.constant 0 : index
    %c0_3 = arith.constant 0 : index
    %4 = vector.load %arg3[%c0_2, %c0_3] : memref<16x128xf32, #tpu.memory_space<vmem>>, vector<16x128xf32>
    %5 = arith.subf %3, %4 : vector<16x128xf32>
    %c0_4 = arith.constant 0 : index
    %c0_5 = arith.constant 0 : index
    %6 = vector.load %arg4[%c0_4, %c0_5] : memref<16x128xf32, #tpu.memory_space<vmem>>, vector<16x128xf32>
    %7 = math.absf %5 : vector<16x128xf32>
    %8 = arith.mulf %7, %6 : vector<16x128xf32>
    %9 = arith.mulf %5, %5 : vector<16x128xf32>
    %c0_6 = arith.constant 0 : index
    %c0_7 = arith.constant 0 : index
    %10 = vector.load %arg5[%c0_6, %c0_7] : memref<16x128xf32, #tpu.memory_space<vmem>>, vector<16x128xf32>
    tpu.vector_store %arg5[%c0_6, %c0_7], %8 {strides = array<i32>} : memref<16x128xf32, #tpu.memory_space<vmem>>, vector<16x128xf32>,
    %c0_8 = arith.constant 0 : index
    %c0_9 = arith.constant 0 : index
    %11 = vector.load %arg6[%c0_8, %c0_9] : memref<16x128xf32, #tpu.memory_space<vmem>>, vector<16x128xf32>
    tpu.vector_store %arg6[%c0_8, %c0_9], %9 {strides = array<i32>} : memref<16x128xf32, #tpu.memory_space<vmem>>, vector<16x128xf32>,
    %c0_10 = arith.constant 0 : index
    %c0_11 = arith.constant 0 : index
    %12 = vector.load %arg10[%c0_10, %c0_11] : memref<16x128xf32, #tpu.memory_space<vmem>>, vector<16x128xf32>
    %13 = arith.addf %12, %8 : vector<16x128xf32>
    %c0_12 = arith.constant 0 : index
    %c0_13 = arith.constant 0 : index
    %14 = vector.load %arg10[%c0_12, %c0_13] : memref<16x128xf32, #tpu.memory_space<vmem>>, vector<16x128xf32>
    tpu.vector_store %arg10[%c0_12, %c0_13], %13 {strides = array<i32>} : memref<16x128xf32, #tpu.memory_space<vmem>>, vector<16x128xf32>,
    %c0_14 = arith.constant 0 : index
    %c0_15 = arith.constant 0 : index
    %15 = vector.load %arg11[%c0_14, %c0_15] : memref<16x128xf32, #tpu.memory_space<vmem>>, vector<16x128xf32>
    %16 = arith.addf %15, %9 : vector<16x128xf32>
    %c0_16 = arith.constant 0 : index
    %c0_17 = arith.constant 0 : index
    %17 = vector.load %arg11[%c0_16, %c0_17] : memref<16x128xf32, #tpu.memory_space<vmem>>, vector<16x128xf32>
    tpu.vector_store %arg11[%c0_16, %c0_17], %16 {strides = array<i32>} : memref<16x128xf32, #tpu.memory_space<vmem>>, vector<16x128xf32>,
    %c0_18 = arith.constant 0 : index
    %c0_19 = arith.constant 0 : index
    %18 = vector.load %arg12[%c0_18, %c0_19] : memref<16x128xf32, #tpu.memory_space<vmem>>, vector<16x128xf32>
    %19 = arith.addf %18, %6 : vector<16x128xf32>
    %c0_20 = arith.constant 0 : index
    %c0_21 = arith.constant 0 : index
    %20 = vector.load %arg12[%c0_20, %c0_21] : memref<16x128xf32, #tpu.memory_space<vmem>>, vector<16x128xf32>
    tpu.vector_store %arg12[%c0_20, %c0_21], %19 {strides = array<i32>} : memref<16x128xf32, #tpu.memory_space<vmem>>, vector<16x128xf32>,
    %c0_i32_22 = arith.constant 0 : i32
    %21 = arith.cmpi eq, %arg1, %c0_i32_22 : i32
    %22 = arith.extui %21 : i1 to i32
    %c0_i32_23 = arith.constant 0 : i32
    %23 = arith.cmpi ne, %22, %c0_i32_23 : i32
    scf.if %23 {
      %c0_24 = arith.constant 0 : index
      %c0_25 = arith.constant 0 : index
      %24 = vector.load %arg10[%c0_24, %c0_25] : memref<16x128xf32, #tpu.memory_space<vmem>>, vector<16x128xf32>
      %25 = vector.shape_cast %24 : vector<16x128xf32> to vector<1x16x128xf32>
      %cst = arith.constant dense<0.000000e+00> : vector<1xf32>
      %26 = vector.multi_reduction <add>, %25, %cst [1, 2] : vector<1x16x128xf32> to vector<1xf32>
      %27 = vector.shape_cast %26 : vector<1xf32> to vector<1x1x1xf32>
      %28 = vector.extract %27[0, 0, 0] : f32 from vector<1x1x1xf32>
      %29 = vector.broadcast %28 : f32 to vector<1x8x128xf32>
      %c0_26 = arith.constant 0 : index
      %c0_27 = arith.constant 0 : index
      %c0_28 = arith.constant 0 : index
      %30 = vector.load %arg7[%c0_26, %c0_27, %c0_28] : memref<1x8x128xf32, #tpu.memory_space<vmem>>, vector<1x8x128xf32>
      tpu.vector_store %arg7[%c0_26, %c0_27, %c0_28], %29 {strides = array<i32>} : memref<1x8x128xf32, #tpu.memory_space<vmem>>, vector<1x8x128xf32>,
      %c0_29 = arith.constant 0 : index
      %c0_30 = arith.constant 0 : index
      %31 = vector.load %arg11[%c0_29, %c0_30] : memref<16x128xf32, #tpu.memory_space<vmem>>, vector<16x128xf32>
      %32 = vector.shape_cast %31 : vector<16x128xf32> to vector<1x16x128xf32>
      %cst_31 = arith.constant dense<0.000000e+00> : vector<1xf32>
      %33 = vector.multi_reduction <add>, %32, %cst_31 [1, 2] : vector<1x16x128xf32> to vector<1xf32>
      %34 = vector.shape_cast %33 : vector<1xf32> to vector<1x1x1xf32>
      %35 = vector.extract %34[0, 0, 0] : f32 from vector<1x1x1xf32>
      %36 = vector.broadcast %35 : f32 to vector<1x8x128xf32>
      %c0_32 = arith.constant 0 : index
      %c0_33 = arith.constant 0 : index
      %c0_34 = arith.constant 0 : index
      %37 = vector.load %arg8[%c0_32, %c0_33, %c0_34] : memref<1x8x128xf32, #tpu.memory_space<vmem>>, vector<1x8x128xf32>
      tpu.vector_store %arg8[%c0_32, %c0_33, %c0_34], %36 {strides = array<i32>} : memref<1x8x128xf32, #tpu.memory_space<vmem>>, vector<1x8x128xf32>,
      %c0_35 = arith.constant 0 : index
      %c0_36 = arith.constant 0 : index
      %38 = vector.load %arg12[%c0_35, %c0_36] : memref<16x128xf32, #tpu.memory_space<vmem>>, vector<16x128xf32>
      %39 = vector.shape_cast %38 : vector<16x128xf32> to vector<1x16x128xf32>
      %cst_37 = arith.constant dense<0.000000e+00> : vector<1xf32>
      %40 = vector.multi_reduction <add>, %39, %cst_37 [1, 2] : vector<1x16x128xf32> to vector<1xf32>
      %41 = vector.shape_cast %40 : vector<1xf32> to vector<1x1x1xf32>
      %42 = vector.extract %41[0, 0, 0] : f32 from vector<1x1x1xf32>
      %43 = vector.broadcast %42 : f32 to vector<1x8x128xf32>
      %c0_38 = arith.constant 0 : index
      %c0_39 = arith.constant 0 : index
      %c0_40 = arith.constant 0 : index
      %44 = vector.load %arg9[%c0_38, %c0_39, %c0_40] : memref<1x8x128xf32, #tpu.memory_space<vmem>>, vector<1x8x128xf32>
      tpu.vector_store %arg9[%c0_38, %c0_39, %c0_40], %43 {strides = array<i32>} : memref<1x8x128xf32, #tpu.memory_space<vmem>>, vector<1x8x128xf32>,
    } else {
    }
    return
  }
  func.func @transform_0(%arg0: i32, %arg1: i32) -> (i32, i32) {
    %c1_i32 = arith.constant 1 : i32
    %0 = arith.muli %arg0, %c1_i32 : i32
    %1 = arith.addi %0, %arg1 : i32
    %c0_i32 = arith.constant 0 : i32
    %c0_i32_0 = arith.constant 0 : i32
    return %1, %c0_i32 : i32, i32
  }
  func.func @transform_1(%arg0: i32, %arg1: i32) -> (i32, i32) {
    %c1_i32 = arith.constant 1 : i32
    %0 = arith.muli %arg0, %c1_i32 : i32
    %1 = arith.addi %0, %arg1 : i32
    %c0_i32 = arith.constant 0 : i32
    %c0_i32_0 = arith.constant 0 : i32
    return %1, %c0_i32 : i32, i32
  }
  func.func @transform_2(%arg0: i32, %arg1: i32) -> (i32, i32) {
    %c1_i32 = arith.constant 1 : i32
    %0 = arith.muli %arg0, %c1_i32 : i32
    %1 = arith.addi %0, %arg1 : i32
    %c0_i32 = arith.constant 0 : i32
    %c0_i32_0 = arith.constant 0 : i32
    return %1, %c0_i32 : i32, i32
  }
  func.func @transform_3(%arg0: i32, %arg1: i32) -> (i32, i32) {
    %c1_i32 = arith.constant 1 : i32
    %0 = arith.muli %arg0, %c1_i32 : i32
    %1 = arith.addi %0, %arg1 : i32
    %c0_i32 = arith.constant 0 : i32
    %c0_i32_0 = arith.constant 0 : i32
    return %1, %c0_i32 : i32, i32
  }
  func.func @transform_4(%arg0: i32, %arg1: i32) -> (i32, i32) {
    %c1_i32 = arith.constant 1 : i32
    %0 = arith.muli %arg0, %c1_i32 : i32
    %1 = arith.addi %0, %arg1 : i32
    %c0_i32 = arith.constant 0 : i32
    %c0_i32_0 = arith.constant 0 : i32
    return %1, %c0_i32 : i32, i32
  }
  func.func @transform_5(%arg0: i32, %arg1: i32) -> (i32, i32, i32) {
    %c0_i32 = arith.constant 0 : i32
    %c0_i32_0 = arith.constant 0 : i32
    %c0_i32_1 = arith.constant 0 : i32
    return %arg0, %c0_i32, %c0_i32_0 : i32, i32, i32
  }
  func.func @transform_6(%arg0: i32, %arg1: i32) -> (i32, i32, i32) {
    %c0_i32 = arith.constant 0 : i32
    %c0_i32_0 = arith.constant 0 : i32
    %c0_i32_1 = arith.constant 0 : i32
    return %arg0, %c0_i32, %c0_i32_0 : i32, i32, i32
  }
  func.func @transform_7(%arg0: i32, %arg1: i32) -> (i32, i32, i32) {
    %c0_i32 = arith.constant 0 : i32
    %c0_i32_0 = arith.constant 0 : i32
    %c0_i32_1 = arith.constant 0 : i32
    return %arg0, %c0_i32, %c0_i32_0 : i32, i32, i32
  }
}

</mosaic_0001>

<llo_original>
// kernel: tpu_custom_call.1
$region0: #{tpu_custom_call.1}
  #allocation0 [shape = 'u32[]', space=smem, size = 0x4, offset = 0x4, fixed_abs, tag = 'smem constant byte address 0x4 - core index']
  #allocation1 [shape = 'u32[144,128]{1,0:T(1,128)}', space=vmem, size = 0x12000, scoped, tag = 'internal scratch']
  #allocation2 [shape = 'f32[16,128]{1,0:T(8,128)}', space=vmem, size = 0x2000, scoped, tag = 'scratch operand']
  #allocation3 [shape = 'f32[16,128]{1,0:T(8,128)}', space=vmem, size = 0x2000, scoped, tag = 'scratch operand']
  #allocation4 [shape = 'f32[16,128]{1,0:T(8,128)}', space=vmem, size = 0x2000, scoped, tag = 'scratch operand']
  %s0 = inlined_call_operand.hbm [shape: f32[16,128], index: 0, kind: input, shape index: {}]
  %s1 = inlined_call_operand.hbm [shape: f32[16,128], index: 1, kind: input, shape index: {}]
  %s2 = inlined_call_operand.hbm [shape: f32[16,128], index: 2, kind: input, shape index: {}]
  %s3 = inlined_call_operand.hbm [shape: f32[16,128], index: 3, kind: output, shape index: {0}]
  %s4 = inlined_call_operand.hbm [shape: f32[16,128], index: 4, kind: output, shape index: {1}]
  %s5 = inlined_call_operand.hbm [shape: f32[1,8,128], index: 5, kind: output, shape index: {2}]
  %s6 = inlined_call_operand.hbm [shape: f32[1,8,128], index: 6, kind: output, shape index: {3}]
  %s7 = inlined_call_operand.hbm [shape: f32[1,8,128], index: 7, kind: output, shape index: {4}]
  %8 = xla_tuple %s3, %s4, %s5, %s6, %s7
  %s9 = sld [smem:[#allocation0]]
  $region74: #{tpu_custom_call.1} parent=0
    _
  %s11 = ssub.s32 1, %s9
  %s12 = scalar_select 0, %s11, %s9
  $region1: #{tpu_custom_call.1} parent=0
    #allocation5 [shape = 'u8[8192]{0}', space=vmem, size = 0x2000, scoped, tag = 'input window, operand 0, single buffered']
    #allocation6 [shape = 's32[1]{0}', space=sflag, size = 0x4, scoped, tag = 'scoped memory for tpu_custom_call.1']
    #allocation7 [shape = 's32[1]{0}', space=sflag, size = 0x4, scoped, tag = 'scoped memory for tpu_custom_call.1']
    #allocation8 [shape = 'u8[8192]{0}', space=vmem, size = 0x2000, scoped, tag = 'input window, operand 1, single buffered']
    #allocation9 [shape = 's32[1]{0}', space=sflag, size = 0x4, scoped, tag = 'scoped memory for tpu_custom_call.1']
    #allocation10 [shape = 'u8[8192]{0}', space=vmem, size = 0x2000, scoped, tag = 'input window, operand 2, single buffered']
    #allocation11 [shape = 'u8[8192]{0}', space=vmem, size = 0x2000, scoped, tag = 'output window, operand 0, single buffered']
    #allocation12 [shape = 'u8[8192]{0}', space=vmem, size = 0x2000, scoped, tag = 'output window, operand 1, single buffered']
    #allocation13 [shape = 's32[1]{0}', space=sflag, size = 0x4, scoped, tag = 'scoped memory for tpu_custom_call.1']
    #allocation14 [shape = 'u8[4096]{0}', space=vmem, size = 0x1000, scoped, tag = 'output window, operand 2, single buffered']
    #allocation15 [shape = 'u8[4096]{0}', space=vmem, size = 0x1000, scoped, tag = 'output window, operand 3, single buffered']
    #allocation16 [shape = 's32[1]{0}', space=sflag, size = 0x4, scoped, tag = 'scoped memory for tpu_custom_call.1']
    #allocation17 [shape = 'u8[4096]{0}', space=vmem, size = 0x1000, scoped, tag = 'output window, operand 4, single buffered']
    %13 = vsyncpa [#allocation6], 0
    %14 = vsyncpa [#allocation9], 0
    %15 = vsyncpa [#allocation7], 0
    %16 = vsyncpa [#allocation13], 0
    %17 = vsyncpa [#allocation16], 0
    // Predicated region
    $region2: #{tpu_custom_call.1} parent=1 // pred_check
      _
    $region3: #{tpu_custom_call.1} parent=1 // pred_check_branch
      %19 = sbr.rel (0) target = $region5
    $region4: #{tpu_custom_call.1} parent=1 // pred_region
      %s20 = sadd.s32 0, 0
      %s21 = smul.u32 2, %s20
      %s23 = ssub.s32 256, 256
      %24 = vsyncadd [#allocation6], %s23
      %s25 = smul.addr %s21, 128
      %s26 = scalar_lea.hbm %s0, %s25
      %s27 = sshll.u32 [#allocation5], 4
      %s28 = int_to_ptr.vmem [resolvable:$true] %s27
      %33 = dma.hbm_to_vmem [thread:$0]  %s26, 256, %s28, [#allocation6], 128, 128, 8
    $region5: #{tpu_custom_call.1} parent=1 // pred_fallthru
      _
    // Predicated region
    $region6: #{tpu_custom_call.1} parent=1 // pred_check
      _
    $region7: #{tpu_custom_call.1} parent=1 // pred_check_branch
      %35 = sbr.rel (0) target = $region9
    $region8: #{tpu_custom_call.1} parent=1 // pred_region
      %s36 = sadd.s32 0, 0
      %s37 = smul.u32 2, %s36
      %s39 = ssub.s32 256, 256
      %40 = vsyncadd [#allocation9], %s39
      %s41 = smul.addr %s37, 128
      %s42 = scalar_lea.hbm %s1, %s41
      %s43 = sshll.u32 [#allocation8], 4
      %s44 = int_to_ptr.vmem [resolvable:$true] %s43
      %49 = dma.hbm_to_vmem [thread:$0]  %s42, 256, %s44, [#allocation9], 128, 128, 8
    $region9: #{tpu_custom_call.1} parent=1 // pred_fallthru
      _
    // Predicated region
    $region10: #{tpu_custom_call.1} parent=1 // pred_check
      _
    $region11: #{tpu_custom_call.1} parent=1 // pred_check_branch
      %51 = sbr.rel (0) target = $region13
    $region12: #{tpu_custom_call.1} parent=1 // pred_region
      %s52 = sadd.s32 0, 0
      %s53 = smul.u32 2, %s52
      %s55 = ssub.s32 256, 256
      %56 = vsyncadd [#allocation9], %s55
      %s57 = smul.addr %s53, 128
      %s58 = scalar_lea.hbm %s2, %s57
      %s59 = sshll.u32 [#allocation10], 4
      %s60 = int_to_ptr.vmem [resolvable:$true] %s59
      %65 = dma.hbm_to_vmem [thread:$0]  %s58, 256, %s60, [#allocation9], 128, 128, 8
    $region13: #{tpu_custom_call.1} parent=1 // pred_fallthru
      _
    // Predicated region
    $region14: #{tpu_custom_call.1} parent=1 // pred_check
      _
    $region15: #{tpu_custom_call.1} parent=1 // pred_check_branch
      %67 = sbr.rel (0) target = $region17
    $region16: #{tpu_custom_call.1} parent=1 // pred_region
      %68 = dma.done [#allocation6], 256
    $region17: #{tpu_custom_call.1} parent=1 // pred_fallthru
      _
    // Predicated region
    $region18: #{tpu_custom_call.1} parent=1 // pred_check
      _
    $region19: #{tpu_custom_call.1} parent=1 // pred_check_branch
      %70 = sbr.rel (0) target = $region21
    $region20: #{tpu_custom_call.1} parent=1 // pred_region
      %71 = dma.done [#allocation9], 256
    $region21: #{tpu_custom_call.1} parent=1 // pred_fallthru
      _
    // Predicated region
    $region22: #{tpu_custom_call.1} parent=1 // pred_check
      _
    $region23: #{tpu_custom_call.1} parent=1 // pred_check_branch
      %73 = sbr.rel (0) target = $region25
    $region24: #{tpu_custom_call.1} parent=1 // pred_region
      %74 = dma.done [#allocation9], 256
    $region25: #{tpu_custom_call.1} parent=1 // pred_fallthru
      _
    %s75 = sadd.s32 0, 0
    %s76 = smul.u32 2, %s75
    %s77 = sadd.s32 0, 0
    %s78 = smul.u32 2, %s77
    %s79 = sadd.s32 0, 0
    %s80 = smul.u32 2, %s79
    %s81 = sadd.s32 0, 0
    %s82 = smul.u32 2, %s81
    %s83 = sadd.s32 0, 0
    %s84 = smul.u32 2, %s83
    %p85 = scmp.eq.s32.totalorder 0, 0
    // Predicated region
    $region26: #{tpu_custom_call.1} parent=1 // pred_check
      %p86 = pneg %p85
    $region27: #{tpu_custom_call.1} parent=1 // pred_check_branch
      %88 = sbr.rel (%p86) target = $region29
    $region28: #{tpu_custom_call.1} parent=1 // pred_region
      %89 = vst [vmem:[#allocation2] sm:$0xff] 0.0
      %90 = vst [vmem:[#allocation2 + $0x8] sm:$0xff] 0.0
      %91 = vst [vmem:[#allocation3] sm:$0xff] 0.0
      %92 = vst [vmem:[#allocation3 + $0x8] sm:$0xff] 0.0
      %93 = vst [vmem:[#allocation4] sm:$0xff] 0.0
      %94 = vst [vmem:[#allocation4 + $0x8] sm:$0xff] 0.0
    $region29: #{tpu_custom_call.1} parent=1 // pred_fallthru
      _
    %v95 = vld [vmem:[#allocation5] sm:$0xff]
    %v96 = vld [vmem:[#allocation5 + $0x8] sm:$0xff]
    %v97 = vld [vmem:[#allocation8] sm:$0xff]
    %v98 = vld [vmem:[#allocation8 + $0x8] sm:$0xff]
    %v99 = vsub.f32 %v95, %v97
    %v100 = vsub.f32 %v96, %v98
    %v101 = vld [vmem:[#allocation10] sm:$0xff]
    %v102 = vld [vmem:[#allocation10 + $0x8] sm:$0xff]
    %v103 = vand.u32 2147483647, %v99
    %v104 = vand.u32 2147483647, %v100
    %v105 = vmul.f32 %v103, %v101
    %v106 = vmul.f32 %v104, %v102
    %v107 = vmul.f32 %v99, %v99
    %v108 = vmul.f32 %v100, %v100
    %109 = vst [vmem:[#allocation11] sm:$0xff] %v105
    %110 = vst [vmem:[#allocation11 + $0x8] sm:$0xff] %v106
    %111 = vst [vmem:[#allocation12] sm:$0xff] %v107
    %112 = vst [vmem:[#allocation12 + $0x8] sm:$0xff] %v108
    %v113 = vld [vmem:[#allocation2] sm:$0xff]
    %v114 = vld [vmem:[#allocation2 + $0x8] sm:$0xff]
    %v115 = vadd.f32 %v113, %v105
    %v116 = vadd.f32 %v114, %v106
    %117 = vst [vmem:[#allocation2] sm:$0xff] %v115
    %118 = vst [vmem:[#allocation2 + $0x8] sm:$0xff] %v116
    %v119 = vld [vmem:[#allocation3] sm:$0xff]
    %v120 = vld [vmem:[#allocation3 + $0x8] sm:$0xff]
    %v121 = vadd.f32 %v119, %v107
    %v122 = vadd.f32 %v120, %v108
    %123 = vst [vmem:[#allocation3] sm:$0xff] %v121
    %124 = vst [vmem:[#allocation3 + $0x8] sm:$0xff] %v122
    %v125 = vld [vmem:[#allocation4] sm:$0xff]
    %v126 = vld [vmem:[#allocation4 + $0x8] sm:$0xff]
    %v127 = vadd.f32 %v125, %v101
    %v128 = vadd.f32 %v126, %v102
    %129 = vst [vmem:[#allocation4] sm:$0xff] %v127
    %130 = vst [vmem:[#allocation4 + $0x8] sm:$0xff] %v128
    // Predicated region
    $region30: #{tpu_custom_call.1} parent=1 // pred_check
      %p131 = pneg %p85
    $region31: #{tpu_custom_call.1} parent=1 // pred_check_branch
      %133 = sbr.rel (%p131) target = $region33
    $region32: #{tpu_custom_call.1} parent=1 // pred_region
      %v134 = vld [vmem:[#allocation2] sm:$0xff]
      %v135 = vld [vmem:[#allocation2 + $0x8] sm:$0xff]
      %v136 = vadd.f32 %v134, %v135
      %137 = vadd.xlane.f32.xlu0 %v136
      %v138 = vpop.xlane.xlu0 %137
      %v139 = vrot.slane %v138, 4
      %v140 = vadd.f32 %v138, %v139
      %v141 = vrot.slane %v140, 2
      %v142 = vadd.f32 %v140, %v141
      %v143 = vrot.slane %v142, 1
      %v144 = vadd.f32 %v142, %v143
      %s145 = vtos %v144
      %v146 = vstv %s145
      %147 = vst [vmem:[#allocation14] sm:$0xff] %v146
      %v148 = vld [vmem:[#allocation3] sm:$0xff]
      %v149 = vld [vmem:[#allocation3 + $0x8] sm:$0xff]
      %v150 = vadd.f32 %v148, %v149
      %151 = vadd.xlane.f32.xlu0 %v150
      %v152 = vpop.xlane.xlu0 %151
      %v153 = vrot.slane %v152, 4
      %v154 = vadd.f32 %v152, %v153
      %v155 = vrot.slane %v154, 2
      %v156 = vadd.f32 %v154, %v155
      %v157 = vrot.slane %v156, 1
      %v158 = vadd.f32 %v156, %v157
      %s159 = vtos %v158
      %v160 = vstv %s159
      %161 = vst [vmem:[#allocation15] sm:$0xff] %v160
      %v162 = vld [vmem:[#allocation4] sm:$0xff]
      %v163 = vld [vmem:[#allocation4 + $0x8] sm:$0xff]
      %v164 = vadd.f32 %v162, %v163
      %165 = vadd.xlane.f32.xlu0 %v164
      %v166 = vpop.xlane.xlu0 %165
      %v167 = vrot.slane %v166, 4
      %v168 = vadd.f32 %v166, %v167
      %v169 = vrot.slane %v168, 2
      %v170 = vadd.f32 %v168, %v169
      %v171 = vrot.slane %v170, 1
      %v172 = vadd.f32 %v170, %v171
      %s173 = vtos %v172
      %v174 = vstv %s173
      %175 = vst [vmem:[#allocation17] sm:$0xff] %v174
    $region33: #{tpu_custom_call.1} parent=1 // pred_fallthru
      _
    // Predicated region
    $region34: #{tpu_custom_call.1} parent=1 // pred_check
      _
    $region35: #{tpu_custom_call.1} parent=1 // pred_check_branch
      %177 = sbr.rel (0) target = $region37
    $region36: #{tpu_custom_call.1} parent=1 // pred_region
      %s178 = sadd.s32 0, 0
      %s179 = smul.u32 2, %s178
      %s181 = ssub.s32 256, 256
      %182 = vsyncadd [#allocation7], %s181
      %s183 = smul.addr %s179, 128
      %s184 = scalar_lea.hbm %s3, %s183
      %s185 = sshll.u32 [#allocation11], 4
      %s186 = int_to_ptr.vmem [resolvable:$true] %s185
      %191 = dma.vmem_to_hbm [thread:$0]  %s186, 256, %s184, [#allocation7], 128, 128, 8
    $region37: #{tpu_custom_call.1} parent=1 // pred_fallthru
      _
    // Predicated region
    $region38: #{tpu_custom_call.1} parent=1 // pred_check
      _
    $region39: #{tpu_custom_call.1} parent=1 // pred_check_branch
      %193 = sbr.rel (0) target = $region41
    $region40: #{tpu_custom_call.1} parent=1 // pred_region
      %s194 = sadd.s32 0, 0
      %s195 = smul.u32 2, %s194
      %s197 = ssub.s32 256, 256
      %198 = vsyncadd [#allocation13], %s197
      %s199 = smul.addr %s195, 128
      %s200 = scalar_lea.hbm %s4, %s199
      %s201 = sshll.u32 [#allocation12], 4
      %s202 = int_to_ptr.vmem [resolvable:$true] %s201
      %207 = dma.vmem_to_hbm [thread:$0]  %s202, 256, %s200, [#allocation13], 128, 128, 8
    $region41: #{tpu_custom_call.1} parent=1 // pred_fallthru
      _
    // Predicated region
    $region42: #{tpu_custom_call.1} parent=1 // pred_check
      _
    $region43: #{tpu_custom_call.1} parent=1 // pred_check_branch
      %209 = sbr.rel (0) target = $region45
    $region44: #{tpu_custom_call.1} parent=1 // pred_region
      %s211 = ssub.s32 128, 128
      %212 = vsyncadd [#allocation13], %s211
      %s214 = sshll.u32 [#allocation14], 4
      %s215 = int_to_ptr.vmem [resolvable:$true] %s214
      %217 = dma.vmem_to_hbm [thread:$0]  %s215, 128, %s5, [#allocation13]
    $region45: #{tpu_custom_call.1} parent=1 // pred_fallthru
      _
    // Predicated region
    $region46: #{tpu_custom_call.1} parent=1 // pred_check
      _
    $region47: #{tpu_custom_call.1} parent=1 // pred_check_branch
      %219 = sbr.rel (0) target = $region49
    $region48: #{tpu_custom_call.1} parent=1 // pred_region
      %s221 = ssub.s32 128, 128
      %222 = vsyncadd [#allocation16], %s221
      %s224 = sshll.u32 [#allocation15], 4
      %s225 = int_to_ptr.vmem [resolvable:$true] %s224
      %227 = dma.vmem_to_hbm [thread:$0]  %s225, 128, %s6, [#allocation16]
    $region49: #{tpu_custom_call.1} parent=1 // pred_fallthru
      _
    // Predicated region
    $region50: #{tpu_custom_call.1} parent=1 // pred_check
      _
    $region51: #{tpu_custom_call.1} parent=1 // pred_check_branch
      %229 = sbr.rel (0) target = $region53
    $region52: #{tpu_custom_call.1} parent=1 // pred_region
      %s231 = ssub.s32 128, 128
      %232 = vsyncadd [#allocation16], %s231
      %s234 = sshll.u32 [#allocation17], 4
      %s235 = int_to_ptr.vmem [resolvable:$true] %s234
      %237 = dma.vmem_to_hbm [thread:$0]  %s235, 128, %s7, [#allocation16]
    $region53: #{tpu_custom_call.1} parent=1 // pred_fallthru
      _
    // Predicated region
    $region54: #{tpu_custom_call.1} parent=1 // pred_check
      _
    $region55: #{tpu_custom_call.1} parent=1 // pred_check_branch
      %239 = sbr.rel (0) target = $region57
    $region56: #{tpu_custom_call.1} parent=1 // pred_region
      %240 = dma.done [#allocation7], 256
    $region57: #{tpu_custom_call.1} parent=1 // pred_fallthru
      _
    // Predicated region
    $region58: #{tpu_custom_call.1} parent=1 // pred_check
      _
    $region59: #{tpu_custom_call.1} parent=1 // pred_check_branch
      %242 = sbr.rel (0) target = $region61
    $region60: #{tpu_custom_call.1} parent=1 // pred_region
      %243 = dma.done [#allocation13], 256
    $region61: #{tpu_custom_call.1} parent=1 // pred_fallthru
      _
    // Predicated region
    $region62: #{tpu_custom_call.1} parent=1 // pred_check
      _
    $region63: #{tpu_custom_call.1} parent=1 // pred_check_branch
      %245 = sbr.rel (0) target = $region65
    $region64: #{tpu_custom_call.1} parent=1 // pred_region
      %246 = dma.done [#allocation13], 128
    $region65: #{tpu_custom_call.1} parent=1 // pred_fallthru
      _
    // Predicated region
    $region66: #{tpu_custom_call.1} parent=1 // pred_check
      _
    $region67: #{tpu_custom_call.1} parent=1 // pred_check_branch
      %248 = sbr.rel (0) target = $region69
    $region68: #{tpu_custom_call.1} parent=1 // pred_region
      %249 = dma.done [#allocation16], 128
    $region69: #{tpu_custom_call.1} parent=1 // pred_fallthru
      _
    // Predicated region
    $region70: #{tpu_custom_call.1} parent=1 // pred_check
      _
    $region71: #{tpu_custom_call.1} parent=1 // pred_check_branch
      %251 = sbr.rel (0) target = $region73
    $region72: #{tpu_custom_call.1} parent=1 // pred_region
      %252 = dma.done [#allocation16], 128
    $region73: #{tpu_custom_call.1} parent=1 // pred_fallthru
      _
    %253 = vsyncpa [#allocation6], 1
    %254 = vsyncpa [#allocation9], 1
    %255 = vsyncpa [#allocation7], 1
    %256 = vsyncpa [#allocation13], 1
    %257 = vsyncpa [#allocation16], 1

</llo_original>
